<compile_context>
chip_gen: v7x
topology: tpu7x:2x2x1
jax: 0.10.0
libtpu: 0.0.40
codegen_flags: <defaults>
</compile_context>

<pallas_src>
import jax
import jax.numpy as jnp
from jax import lax
from jax.experimental import pallas as pl
from jax.experimental.pallas import tpu as pltpu


NUM_SLICES = 2  # leading "parallel" grid axis -> 2 TensorCores on v7x


def _round_up(x: int, m: int) -> int:
    return (x + m - 1) // m * m


def _make_ece_kernel(n: int, c: int, tile_n: int, n_bins: int):
    bins_f = float(n_bins)

    def kernel(logits_ref, labels_ref,                 # inputs
               count_ref, conf_sum_ref, acc_sum_ref):  # outputs (= accumulators)
        t = pl.program_id(1)

        @pl.when(t == 0)
        def _init():
            count_ref[...] = jnp.zeros_like(count_ref)
            conf_sum_ref[...] = jnp.zeros_like(conf_sum_ref)
            acc_sum_ref[...] = jnp.zeros_like(acc_sum_ref)

        logits = logits_ref[...].astype(jnp.float32)        # (tile_n, c)
        labels = labels_ref[...]                            # (tile_n, 1) int32

        # max(softmax) == 1 / sum(exp(x - rowmax)): the argmax element
        # contributes exp(0) == 1, so the softmax is never materialized.
        row_max = jnp.max(logits, axis=1, keepdims=True)     # (tile_n, 1)
        denom = jnp.sum(jnp.exp(logits - row_max), axis=1, keepdims=True)
        conf = 1.0 / denom                                    # exact f32 path

        # argmax on logits (softmax is monotonic); min index on ties matches
        # torch.max(dim=1) first-occurrence semantics.
        col = lax.broadcasted_iota(jnp.int32, (tile_n, c), 1)
        pred = jnp.min(jnp.where(logits >= row_max, col, jnp.int32(c)),
                       axis=1, keepdims=True)                 # (tile_n, 1)

        # Row validity from the *unclamped* global tile index: masks both the
        # partial last tile and any duplicated (clamped) tile on slice 1.
        g = pl.program_id(0) * pl.num_programs(1) + t
        row = g * tile_n + lax.broadcasted_iota(jnp.int32, (tile_n, 1), 0)
        valid = row < n                                       # (tile_n, 1)

        acc_f = jnp.logical_and(pred == labels, valid).astype(jnp.float32)

        # Compile-time bin boundaries (no DMA'd bounds input).
        bin_idx = lax.broadcasted_iota(jnp.int32, (1, n_bins), 1).astype(jnp.float32)
        lo = bin_idx / bins_f                                 # (1, n_bins)
        hi = (bin_idx + 1.0) / bins_f

        in_bin = jnp.logical_and(jnp.logical_and(conf > lo, conf <= hi), valid)
        in_bin_f = in_bin.astype(jnp.float32)                 # (tile_n, n_bins)

        count_ref[...] += jnp.sum(in_bin_f, axis=0, keepdims=True)[None]
        conf_sum_ref[...] += jnp.sum(jnp.where(in_bin, conf, 0.0),
                                     axis=0, keepdims=True)[None]
        acc_sum_ref[...] += jnp.sum(jnp.where(in_bin, acc_f, 0.0),
                                    axis=0, keepdims=True)[None]

    return kernel


def ece_loss(logits: jax.Array, labels: jax.Array,
             n_bins: int = 15, tile_n: int | None = None):
    """Pallas implementation of _ECELoss.forward.

    logits: (N, C) float (any float dtype); labels: (N,) int.
    Returns (ece, accuracy_percent) as 0-d float32 arrays.
    """
    n, c = logits.shape
    labels2d = labels.reshape(n, 1).astype(jnp.int32)
    itemsize = jnp.dtype(logits.dtype).itemsize

    rows_per_slice = pl.cdiv(n, NUM_SLICES)

    # Per-row VMEM footprint: double-buffered native block + f32 upcast/exp
    # temporaries + (tile_n, n_bins) mask temporaries + labels.
    per_row_vmem = 2 * c * itemsize + 3 * c * 4 + 2 * n_bins * 4 + 2 * 4

    if tile_n is None:
        vmem_budget = 32 << 20
        tile_n = min(max(vmem_budget // per_row_vmem, 8),
                     max((2 << 20) // max(c * itemsize, 1), 8),
                     16384)
    tile_n = min(_round_up(max(tile_n, 8), 8), _round_up(rows_per_slice, 8))

    num_tiles = pl.cdiv(n, tile_n)
    tiles_per_slice = pl.cdiv(num_tiles, NUM_SLICES)
    grid = (NUM_SLICES, tiles_per_slice)

    def in_map(s, t):
        # Clamp so the DMA stays in-bounds on an odd tile count; duplicated
        # tiles are zeroed out by the in-kernel validity mask.
        return (jnp.minimum(s * tiles_per_slice + t, num_tiles - 1), 0)

    def out_map(s, t):
        return (s, 0, 0)

    kernel = _make_ece_kernel(n, c, tile_n, n_bins)

    vmem_limit = int(min(max(tile_n * per_row_vmem + (2 << 20), 8 << 20),
                         40 << 20))

    out_struct = jax.ShapeDtypeStruct((NUM_SLICES, 1, n_bins), jnp.float32)
    counts_p, conf_p, acc_p = pl.pallas_call(
        kernel,
        out_shape=(out_struct, out_struct, out_struct),
        grid_spec=pltpu.PrefetchScalarGridSpec(
            num_scalar_prefetch=0,
            grid=grid,
            in_specs=[
                pl.BlockSpec((tile_n, c), in_map),
                pl.BlockSpec((tile_n, 1), in_map),
            ],
            out_specs=(
                pl.BlockSpec((1, 1, n_bins), out_map),
                pl.BlockSpec((1, 1, n_bins), out_map),
                pl.BlockSpec((1, 1, n_bins), out_map),
            ),
        ),
        compiler_params=pltpu.CompilerParams(
            dimension_semantics=("parallel", "arbitrary"),
            vmem_limit_bytes=vmem_limit,
        ),
    )(logits, labels2d)

    # Tiny per-bin combine (15 elements) in plain JAX.
    counts = jnp.sum(counts_p, axis=(0, 1))       # (n_bins,)
    conf_sums = jnp.sum(conf_p, axis=(0, 1))
    acc_sums = jnp.sum(acc_p, axis=(0, 1))

    n_f = jnp.float32(n)
    safe = jnp.maximum(counts, 1.0)
    prop = counts / n_f
    gap = jnp.where(counts > 0.0,
                    jnp.abs(conf_sums / safe - acc_sums / safe) * prop, 0.0)
    ece = jnp.sum(gap)
    accuracy = jnp.sum(acc_sums) * (100.0 / n_f)
    return ece, accuracy


def _reference_ece(logits, labels, n_bins=15):
    # Pure-JAX reference mirroring the PyTorch module.
    sm = jax.nn.softmax(logits, axis=1)
    conf = jnp.max(sm, axis=1)
    pred = jnp.argmax(sm, axis=1)
    acc = (pred == labels).astype(jnp.float32)
    ece = 0.0
    for b in range(n_bins):
        lo, hi = b / n_bins, (b + 1) / n_bins
        in_bin = (conf > lo) & (conf <= hi)
        cnt = jnp.sum(in_bin.astype(jnp.float32))
        prop = cnt / conf.shape[0]
        avg_c = jnp.sum(jnp.where(in_bin, conf, 0.0)) / jnp.maximum(cnt, 1.0)
        avg_a = jnp.sum(jnp.where(in_bin, acc, 0.0)) / jnp.maximum(cnt, 1.0)
        ece = ece + jnp.where(cnt > 0, jnp.abs(avg_c - avg_a) * prop, 0.0)
    return ece, jnp.mean(acc) * 100.0


def _check(n, c, n_bins=15, tile_n=None, seed=0):
    key = jax.random.PRNGKey(seed)
    k1, k2 = jax.random.split(key)
    logits = jax.random.normal(k1, (n, c), dtype=jnp.float32) * 3.0
    labels = jax.random.randint(k2, (n,), 0, c, dtype=jnp.int32)
    ece, acc = ece_loss(logits, labels, n_bins=n_bins, tile_n=tile_n)
    jax.block_until_ready((ece, acc))
    ece_r, acc_r = _reference_ece(logits, labels, n_bins=n_bins)
    assert abs(float(ece) - float(ece_r)) < 1e-5, (n, c, float(ece), float(ece_r))
    assert abs(float(acc) - float(acc_r)) < 1e-4, (n, c, float(acc), float(acc_r))


if __name__ == "__main__":
    # Auto tile sizing; 2-slice parallel axis, one tile per slice.
    _check(64, 16)
    # N not a multiple of the tile: exercises the partial-tile row mask.
    _check(52, 16, tile_n=16)
    # Odd number of tiles (3): exercises the clamped/duplicated-tile path.
    _check(40, 16, tile_n=16)
    print("KERNEL_OK")
</pallas_src>

<mosaic_0001>
module attributes {stable_mosaic.version = 11 : i64} {
  func.func @kernel(%arg0: i32, %arg1: i32, %arg2: memref<32x16xf32, #tpu.memory_space<vmem>>, %arg3: memref<32x1xi32, #tpu.memory_space<vmem>>, %arg4: memref<1x1x15xf32, #tpu.memory_space<vmem>>, %arg5: memref<1x1x15xf32, #tpu.memory_space<vmem>>, %arg6: memref<1x1x15xf32, #tpu.memory_space<vmem>>) attributes {dimension_semantics = [#tpu.dimension_semantics<parallel>, #tpu.dimension_semantics<arbitrary>], iteration_bounds = array<i64: 2, 1>, scalar_prefetch = 0 : i64, scratch_operands = 0 : i64, tpu.core_type = #tpu.core_type<tc>, window_params = [{transform_indices = @transform_0, window_bounds = array<i64: 32, 16>}, {transform_indices = @transform_1, window_bounds = array<i64: 32, 1>}, {transform_indices = @transform_2, window_bounds = array<i64: 1, 1, 15>}, {transform_indices = @transform_3, window_bounds = array<i64: 1, 1, 15>}, {transform_indices = @transform_4, window_bounds = array<i64: 1, 1, 15>}]} {
    %c0_i32 = arith.constant 0 : i32
    %0 = arith.cmpi eq, %arg1, %c0_i32 : i32
    %1 = arith.extui %0 : i1 to i32
    %c0_i32_0 = arith.constant 0 : i32
    %2 = arith.cmpi ne, %1, %c0_i32_0 : i32
    scf.if %2 {
      %cst_33 = arith.constant 0.000000e+00 : f32
      %78 = vector.broadcast %cst_33 : f32 to vector<1x1x15xf32>
      %c0_34 = arith.constant 0 : index
      %c0_35 = arith.constant 0 : index
      %c0_36 = arith.constant 0 : index
      %79 = vector.load %arg4[%c0_34, %c0_35, %c0_36] : memref<1x1x15xf32, #tpu.memory_space<vmem>>, vector<1x1x15xf32>
      tpu.vector_store %arg4[%c0_34, %c0_35, %c0_36], %78 {strides = array<i32>} : memref<1x1x15xf32, #tpu.memory_space<vmem>>, vector<1x1x15xf32>,
      %cst_37 = arith.constant 0.000000e+00 : f32
      %80 = vector.broadcast %cst_37 : f32 to vector<1x1x15xf32>
      %c0_38 = arith.constant 0 : index
      %c0_39 = arith.constant 0 : index
      %c0_40 = arith.constant 0 : index
      %81 = vector.load %arg5[%c0_38, %c0_39, %c0_40] : memref<1x1x15xf32, #tpu.memory_space<vmem>>, vector<1x1x15xf32>
      tpu.vector_store %arg5[%c0_38, %c0_39, %c0_40], %80 {strides = array<i32>} : memref<1x1x15xf32, #tpu.memory_space<vmem>>, vector<1x1x15xf32>,
      %cst_41 = arith.constant 0.000000e+00 : f32
      %82 = vector.broadcast %cst_41 : f32 to vector<1x1x15xf32>
      %c0_42 = arith.constant 0 : index
      %c0_43 = arith.constant 0 : index
      %c0_44 = arith.constant 0 : index
      %83 = vector.load %arg6[%c0_42, %c0_43, %c0_44] : memref<1x1x15xf32, #tpu.memory_space<vmem>>, vector<1x1x15xf32>
      tpu.vector_store %arg6[%c0_42, %c0_43, %c0_44], %82 {strides = array<i32>} : memref<1x1x15xf32, #tpu.memory_space<vmem>>, vector<1x1x15xf32>,
    } else {
    }
    %c0 = arith.constant 0 : index
    %c0_1 = arith.constant 0 : index
    %3 = vector.load %arg2[%c0, %c0_1] : memref<32x16xf32, #tpu.memory_space<vmem>>, vector<32x16xf32>
    %c0_2 = arith.constant 0 : index
    %c0_3 = arith.constant 0 : index
    %4 = vector.load %arg3[%c0_2, %c0_3] : memref<32x1xi32, #tpu.memory_space<vmem>>, vector<32x1xi32>
    %cst = arith.constant dense<0xFF800000> : vector<32xf32>
    %5 = vector.multi_reduction <maximumf>, %3, %cst [1] : vector<32x16xf32> to vector<32xf32>
    %6 = vector.shape_cast %5 : vector<32xf32> to vector<32x1xf32>
    %7 = vector.broadcast %6 : vector<32x1xf32> to vector<32x16xf32>
    %8 = arith.subf %3, %7 : vector<32x16xf32>
    %9 = math.exp %8 : vector<32x16xf32>
    %cst_4 = arith.constant dense<0.000000e+00> : vector<32xf32>
    %10 = vector.multi_reduction <add>, %9, %cst_4 [1] : vector<32x16xf32> to vector<32xf32>
    %11 = vector.shape_cast %10 : vector<32xf32> to vector<32x1xf32>
    %cst_5 = arith.constant 1.000000e+00 : f32
    %12 = vector.broadcast %cst_5 : f32 to vector<32x1xf32>
    %13 = arith.divf %12, %11 : vector<32x1xf32>
    %14 = tpu.iota {dimensions = array<i32: 1>} : vector<32x16xi32>
    %15 = vector.broadcast %6 : vector<32x1xf32> to vector<32x16xf32>
    %16 = arith.cmpf oge, %3, %15 : vector<32x16xf32>
    %c16_i32 = arith.constant 16 : i32
    %17 = vector.broadcast %c16_i32 : i32 to vector<32x16xi32>
    %18 = arith.select %16, %14, %17 : vector<32x16xi1>, vector<32x16xi32>
    %cst_6 = arith.constant dense<2147483647> : vector<32xi32>
    %19 = vector.multi_reduction <minsi>, %18, %cst_6 [1] : vector<32x16xi32> to vector<32xi32>
    %20 = vector.shape_cast %19 : vector<32xi32> to vector<32x1xi32>
    %c1_i32 = arith.constant 1 : i32
    %21 = arith.muli %arg0, %c1_i32 : i32
    %22 = arith.addi %21, %arg1 : i32
    %c32_i32 = arith.constant 32 : i32
    %23 = arith.muli %22, %c32_i32 : i32
    %24 = tpu.iota {dimensions = array<i32: 0>} : vector<32x1xi32>
    %25 = vector.broadcast %23 : i32 to vector<32x1xi32>
    %26 = arith.addi %25, %24 : vector<32x1xi32>
    %c64_i32 = arith.constant 64 : i32
    %27 = vector.broadcast %c64_i32 : i32 to vector<32x1xi32>
    %28 = arith.cmpi slt, %26, %27 : vector<32x1xi32>
    %29 = arith.cmpi eq, %20, %4 : vector<32x1xi32>
    %30 = arith.andi %29, %28 : vector<32x1xi1>
    %31 = arith.extui %30 : vector<32x1xi1> to vector<32x1xi32>
    %32 = arith.sitofp %31 : vector<32x1xi32> to vector<32x1xf32>
    %33 = tpu.iota {dimensions = array<i32: 1>} : vector<1x15xi32>
    %34 = arith.sitofp %33 : vector<1x15xi32> to vector<1x15xf32>
    %cst_7 = arith.constant 1.500000e+01 : f32
    %35 = vector.broadcast %cst_7 : f32 to vector<1x15xf32>
    %36 = arith.divf %34, %35 : vector<1x15xf32>
    %cst_8 = arith.constant 1.000000e+00 : f32
    %37 = vector.broadcast %cst_8 : f32 to vector<1x15xf32>
    %38 = arith.addf %34, %37 : vector<1x15xf32>
    %cst_9 = arith.constant 1.500000e+01 : f32
    %39 = vector.broadcast %cst_9 : f32 to vector<1x15xf32>
    %40 = arith.divf %38, %39 : vector<1x15xf32>
    %41 = vector.broadcast %13 : vector<32x1xf32> to vector<32x15xf32>
    %42 = vector.broadcast %36 : vector<1x15xf32> to vector<32x15xf32>
    %43 = arith.cmpf ogt, %41, %42 : vector<32x15xf32>
    %44 = vector.broadcast %13 : vector<32x1xf32> to vector<32x15xf32>
    %45 = vector.broadcast %40 : vector<1x15xf32> to vector<32x15xf32>
    %46 = arith.cmpf ole, %44, %45 : vector<32x15xf32>
    %47 = arith.andi %43, %46 : vector<32x15xi1>
    %48 = vector.broadcast %28 : vector<32x1xi1> to vector<32x15xi1>
    %49 = arith.andi %47, %48 : vector<32x15xi1>
    %50 = arith.extui %49 : vector<32x15xi1> to vector<32x15xi32>
    %51 = arith.sitofp %50 : vector<32x15xi32> to vector<32x15xf32>
    %c0_10 = arith.constant 0 : index
    %c0_11 = arith.constant 0 : index
    %c0_12 = arith.constant 0 : index
    %52 = vector.load %arg4[%c0_10, %c0_11, %c0_12] : memref<1x1x15xf32, #tpu.memory_space<vmem>>, vector<1x1x15xf32>
    %cst_13 = arith.constant dense<0.000000e+00> : vector<15xf32>
    %53 = vector.multi_reduction <add>, %51, %cst_13 [0] : vector<32x15xf32> to vector<15xf32>
    %54 = vector.shape_cast %53 : vector<15xf32> to vector<1x15xf32>
    %55 = vector.shape_cast %54 : vector<1x15xf32> to vector<1x1x15xf32>
    %56 = arith.addf %52, %55 : vector<1x1x15xf32>
    %c0_14 = arith.constant 0 : index
    %c0_15 = arith.constant 0 : index
    %c0_16 = arith.constant 0 : index
    %57 = vector.load %arg4[%c0_14, %c0_15, %c0_16] : memref<1x1x15xf32, #tpu.memory_space<vmem>>, vector<1x1x15xf32>
    tpu.vector_store %arg4[%c0_14, %c0_15, %c0_16], %56 {strides = array<i32>} : memref<1x1x15xf32, #tpu.memory_space<vmem>>, vector<1x1x15xf32>,
    %c0_17 = arith.constant 0 : index
    %c0_18 = arith.constant 0 : index
    %c0_19 = arith.constant 0 : index
    %58 = vector.load %arg5[%c0_17, %c0_18, %c0_19] : memref<1x1x15xf32, #tpu.memory_space<vmem>>, vector<1x1x15xf32>
    %cst_20 = arith.constant 0.000000e+00 : f32
    %59 = vector.shape_cast %13 : vector<32x1xf32> to vector<32x1xf32>
    %60 = vector.broadcast %59 : vector<32x1xf32> to vector<32x15xf32>
    %61 = vector.broadcast %cst_20 : f32 to vector<32x15xf32>
    %62 = arith.select %49, %60, %61 : vector<32x15xi1>, vector<32x15xf32>
    %cst_21 = arith.constant dense<0.000000e+00> : vector<15xf32>
    %63 = vector.multi_reduction <add>, %62, %cst_21 [0] : vector<32x15xf32> to vector<15xf32>
    %64 = vector.shape_cast %63 : vector<15xf32> to vector<1x15xf32>
    %65 = vector.shape_cast %64 : vector<1x15xf32> to vector<1x1x15xf32>
    %66 = arith.addf %58, %65 : vector<1x1x15xf32>
    %c0_22 = arith.constant 0 : index
    %c0_23 = arith.constant 0 : index
    %c0_24 = arith.constant 0 : index
    %67 = vector.load %arg5[%c0_22, %c0_23, %c0_24] : memref<1x1x15xf32, #tpu.memory_space<vmem>>, vector<1x1x15xf32>
    tpu.vector_store %arg5[%c0_22, %c0_23, %c0_24], %66 {strides = array<i32>} : memref<1x1x15xf32, #tpu.memory_space<vmem>>, vector<1x1x15xf32>,
    %c0_25 = arith.constant 0 : index
    %c0_26 = arith.constant 0 : index
    %c0_27 = arith.constant 0 : index
    %68 = vector.load %arg6[%c0_25, %c0_26, %c0_27] : memref<1x1x15xf32, #tpu.memory_space<vmem>>, vector<1x1x15xf32>
    %cst_28 = arith.constant 0.000000e+00 : f32
    %69 = vector.shape_cast %32 : vector<32x1xf32> to vector<32x1xf32>
    %70 = vector.broadcast %69 : vector<32x1xf32> to vector<32x15xf32>
    %71 = vector.broadcast %cst_28 : f32 to vector<32x15xf32>
    %72 = arith.select %49, %70, %71 : vector<32x15xi1>, vector<32x15xf32>
    %cst_29 = arith.constant dense<0.000000e+00> : vector<15xf32>
    %73 = vector.multi_reduction <add>, %72, %cst_29 [0] : vector<32x15xf32> to vector<15xf32>
    %74 = vector.shape_cast %73 : vector<15xf32> to vector<1x15xf32>
    %75 = vector.shape_cast %74 : vector<1x15xf32> to vector<1x1x15xf32>
    %76 = arith.addf %68, %75 : vector<1x1x15xf32>
    %c0_30 = arith.constant 0 : index
    %c0_31 = arith.constant 0 : index
    %c0_32 = arith.constant 0 : index
    %77 = vector.load %arg6[%c0_30, %c0_31, %c0_32] : memref<1x1x15xf32, #tpu.memory_space<vmem>>, vector<1x1x15xf32>
    tpu.vector_store %arg6[%c0_30, %c0_31, %c0_32], %76 {strides = array<i32>} : memref<1x1x15xf32, #tpu.memory_space<vmem>>, vector<1x1x15xf32>,
    return
  }
  func.func @transform_0(%arg0: i32, %arg1: i32) -> (i32, i32) {
    %c1_i32 = arith.constant 1 : i32
    %0 = arith.muli %arg0, %c1_i32 : i32
    %1 = arith.addi %0, %arg1 : i32
    %c1_i32_0 = arith.constant 1 : i32
    %2 = arith.minsi %1, %c1_i32_0 : i32
    %c0_i32 = arith.constant 0 : i32
    %c0_i32_1 = arith.constant 0 : i32
    return %2, %c0_i32 : i32, i32
  }
  func.func @transform_1(%arg0: i32, %arg1: i32) -> (i32, i32) {
    %c1_i32 = arith.constant 1 : i32
    %0 = arith.muli %arg0, %c1_i32 : i32
    %1 = arith.addi %0, %arg1 : i32
    %c1_i32_0 = arith.constant 1 : i32
    %2 = arith.minsi %1, %c1_i32_0 : i32
    %c0_i32 = arith.constant 0 : i32
    %c0_i32_1 = arith.constant 0 : i32
    return %2, %c0_i32 : i32, i32
  }
  func.func @transform_2(%arg0: i32, %arg1: i32) -> (i32, i32, i32) {
    %c0_i32 = arith.constant 0 : i32
    %c0_i32_0 = arith.constant 0 : i32
    %c0_i32_1 = arith.constant 0 : i32
    return %arg0, %c0_i32, %c0_i32_0 : i32, i32, i32
  }
  func.func @transform_3(%arg0: i32, %arg1: i32) -> (i32, i32, i32) {
    %c0_i32 = arith.constant 0 : i32
    %c0_i32_0 = arith.constant 0 : i32
    %c0_i32_1 = arith.constant 0 : i32
    return %arg0, %c0_i32, %c0_i32_0 : i32, i32, i32
  }
  func.func @transform_4(%arg0: i32, %arg1: i32) -> (i32, i32, i32) {
    %c0_i32 = arith.constant 0 : i32
    %c0_i32_0 = arith.constant 0 : i32
    %c0_i32_1 = arith.constant 0 : i32
    return %arg0, %c0_i32, %c0_i32_0 : i32, i32, i32
  }
}

</mosaic_0001>

<llo_original>
// kernel: tpu_custom_call.1
$region0: #{tpu_custom_call.1}
  #allocation0 [shape = 'u32[]', space=smem, size = 0x4, offset = 0x4, fixed_abs, tag = 'smem constant byte address 0x4 - core index']
  #allocation1 [shape = 'u32[144,128]{1,0:T(1,128)}', space=vmem, size = 0x12000, scoped, tag = 'internal scratch']
  %s0 = inlined_call_operand.vmem [shape: f32[64,16], index: 0, kind: input, shape index: {}]
  %s1 = inlined_call_operand.vmem [shape: s32[64,1], index: 1, kind: input, shape index: {}]
  %s2 = inlined_call_operand.hbm [shape: f32[2,1,15], index: 2, kind: output, shape index: {0}]
  %s3 = inlined_call_operand.hbm [shape: f32[2,1,15], index: 3, kind: output, shape index: {1}]
  %s4 = inlined_call_operand.hbm [shape: f32[2,1,15], index: 4, kind: output, shape index: {2}]
  %5 = xla_tuple %s2, %s3, %s4
  %s6 = sld [smem:[#allocation0]]
  $region61: #{tpu_custom_call.1} parent=0
    _
  %s8 = ssub.s32 1, %s6
  %s9 = scalar_select 0, %s8, %s6
  $region1: #{tpu_custom_call.1} parent=0
    #allocation2 [shape = 'u8[1024]{0}', space=vmem, size = 0x400, scoped, tag = 'output window, operand 0']
    #allocation3 [shape = 's32[2]{0}', space=sflag, size = 0x8, scoped, tag = 'scoped memory for tpu_custom_call.1']
    #allocation4 [shape = 'u8[1024]{0}', space=vmem, size = 0x400, scoped, tag = 'output window, operand 1']
    #allocation5 [shape = 's32[2]{0}', space=sflag, size = 0x8, scoped, tag = 'scoped memory for tpu_custom_call.1']
    #allocation6 [shape = 'u8[1024]{0}', space=vmem, size = 0x400, scoped, tag = 'output window, operand 2']
    %10 = vsyncpa [#allocation3], 0
    %s11 = scalar_lea.sflag [#allocation3], 1
    %12 = vsyncpa %s11, 0
    %13 = vsyncpa [#allocation5], 0
    %s14 = scalar_lea.sflag [#allocation5], 1
    %15 = vsyncpa %s14, 0
    loop: start=0, step=1, limit=4
    $region2: #{tpu_custom_call.1} parent=1 // loop_pre_header
      _
    $region3: #{tpu_custom_call.1} parent=1 // loop_header
      %s17 = sphi 0, %s21
      %p18 = scmp.ge.s32.totalorder %s17, 4
      %s24 = sphi 0, %s36
      %s25 = sphi 0, %s32
      %s26 = sphi 0, %s24
      %s27 = sphi 0, %s25
      %s28 = sphi 0, %s26
      %s29 = sphi 0, %s27
      %s45 = sphi 0, %s47
      %s48 = sphi 0, %s45
      %s49 = sphi 0, %s48
      %s65 = sphi 0, %s49
      %s77 = sphi 0, %s79
      %s80 = sphi 0, %s77
      %s81 = sphi 0, %s80
      %s97 = sphi 0, %s81
      %s103 = sphi 0, %s105
      %s106 = sphi 0, %s103
      %s107 = sphi 0, %s106
      %s123 = sphi 0, %s107
      %s129 = sphi 0, %s131
      %s132 = sphi 0, %s129
      %s133 = sphi 0, %s132
      %s149 = sphi 0, %s133
      %s155 = sphi 0, %s157
      %s158 = sphi 0, %s155
      %s159 = sphi 0, %s158
      %s175 = sphi 0, %s159
    $region4: #{tpu_custom_call.1} parent=1 // loop_header_branch
      %20 = sbr.rel (%p18) target = $region8
    $region5: #{tpu_custom_call.1} parent=1 // loop_body
      %s22 = ssub.s32 %s17, 1
      %s23 = ssub.s32 %s17, 2
      %s30 = sadd.s32 1, %s25
      %p31 = scmp.ge.s32.totalorder %s30, 1
      %s32 = scalar_select %p31, 0, %s30
      %s33 = sadd.s32 1, %s24
      %s34 = scalar_select %p31, %s33, %s24
      %p35 = scmp.ge.s32.totalorder %s34, 2
      %s36 = scalar_select %p35, 0, %s34
      %s37 = sadd.s32 %s24, %s25
      %p38 = scmp.lt.s32.totalorder %s37, 1
      %s39 = scalar_select %p38, %s37, 1
      %s40 = sadd.s32 %s36, %s32
      %p41 = scmp.lt.s32.totalorder %s40, 1
      %s42 = scalar_select %p41, %s40, 1
      %s43 = ssub.s32 %s39, %s42
      %p44 = scmp.eq.s32.totalorder %s43, 0
      %s46 = sadd.s32 %s45, 1
      %s47 = scalar_select %p44, %s45, %s46
      %p50 = pneg %p44
      %p51 = scmp.eq.s32.totalorder %s17, 1
      %p52 = por %p50, %p51
      %p53 = scmp.ne.s32.totalorder %s45, %s48
      %p54 = scmp.eq.s32.totalorder %s17, 0
      %p55 = por %p53, %p54
      %p56 = scmp.ne.s32.totalorder %s45, %s48
      %p57 = scmp.eq.s32.totalorder %s22, 1
      %p58 = por %p56, %p57
      %p59 = scmp.ne.s32.totalorder %s48, %s49
      %p60 = scmp.eq.s32.totalorder %s22, 0
      %p61 = por %p59, %p60
      %p62 = scmp.ne.s32.totalorder %s48, %s49
      %p63 = scmp.eq.s32.totalorder %s23, 1
      %p64 = por %p62, %p63
      %p66 = scmp.ne.s32.totalorder %s49, %s65
      %p67 = scmp.eq.s32.totalorder %s23, 0
      %p68 = por %p66, %p67
      %s69 = sadd.s32 %s24, %s25
      %p70 = scmp.lt.s32.totalorder %s69, 1
      %s71 = scalar_select %p70, %s69, 1
      %s72 = sadd.s32 %s36, %s32
      %p73 = scmp.lt.s32.totalorder %s72, 1
      %s74 = scalar_select %p73, %s72, 1
      %s75 = ssub.s32 %s71, %s74
      %p76 = scmp.eq.s32.totalorder %s75, 0
      %s78 = sadd.s32 %s77, 1
      %s79 = scalar_select %p76, %s77, %s78
      %p82 = pneg %p76
      %p83 = scmp.eq.s32.totalorder %s17, 1
      %p84 = por %p82, %p83
      %p85 = scmp.ne.s32.totalorder %s77, %s80
      %p86 = scmp.eq.s32.totalorder %s17, 0
      %p87 = por %p85, %p86
      %p88 = scmp.ne.s32.totalorder %s77, %s80
      %p89 = scmp.eq.s32.totalorder %s22, 1
      %p90 = por %p88, %p89
      %p91 = scmp.ne.s32.totalorder %s80, %s81
      %p92 = scmp.eq.s32.totalorder %s22, 0
      %p93 = por %p91, %p92
      %p94 = scmp.ne.s32.totalorder %s80, %s81
      %p95 = scmp.eq.s32.totalorder %s23, 1
      %p96 = por %p94, %p95
      %p98 = scmp.ne.s32.totalorder %s81, %s97
      %p99 = scmp.eq.s32.totalorder %s23, 0
      %p100 = por %p98, %p99
      %s101 = ssub.s32 %s24, %s36
      %p102 = scmp.eq.s32.totalorder %s101, 0
      %s104 = sadd.s32 %s103, 1
      %s105 = scalar_select %p102, %s103, %s104
      %p108 = pneg %p102
      %p109 = scmp.eq.s32.totalorder %s17, 1
      %p110 = por %p108, %p109
      %p111 = scmp.ne.s32.totalorder %s103, %s106
      %p112 = scmp.eq.s32.totalorder %s17, 0
      %p113 = por %p111, %p112
      %p114 = scmp.ne.s32.totalorder %s103, %s106
      %p115 = scmp.eq.s32.totalorder %s22, 1
      %p116 = por %p114, %p115
      %p117 = scmp.ne.s32.totalorder %s106, %s107
      %p118 = scmp.eq.s32.totalorder %s22, 0
      %p119 = por %p117, %p118
      %p120 = scmp.ne.s32.totalorder %s106, %s107
      %p121 = scmp.eq.s32.totalorder %s23, 1
      %p122 = por %p120, %p121
      %p124 = scmp.ne.s32.totalorder %s107, %s123
      %p125 = scmp.eq.s32.totalorder %s23, 0
      %p126 = por %p124, %p125
      %s127 = ssub.s32 %s24, %s36
      %p128 = scmp.eq.s32.totalorder %s127, 0
      %s130 = sadd.s32 %s129, 1
      %s131 = scalar_select %p128, %s129, %s130
      %p134 = pneg %p128
      %p135 = scmp.eq.s32.totalorder %s17, 1
      %p136 = por %p134, %p135
      %p137 = scmp.ne.s32.totalorder %s129, %s132
      %p138 = scmp.eq.s32.totalorder %s17, 0
      %p139 = por %p137, %p138
      %p140 = scmp.ne.s32.totalorder %s129, %s132
      %p141 = scmp.eq.s32.totalorder %s22, 1
      %p142 = por %p140, %p141
      %p143 = scmp.ne.s32.totalorder %s132, %s133
      %p144 = scmp.eq.s32.totalorder %s22, 0
      %p145 = por %p143, %p144
      %p146 = scmp.ne.s32.totalorder %s132, %s133
      %p147 = scmp.eq.s32.totalorder %s23, 1
      %p148 = por %p146, %p147
      %p150 = scmp.ne.s32.totalorder %s133, %s149
      %p151 = scmp.eq.s32.totalorder %s23, 0
      %p152 = por %p150, %p151
      %s153 = ssub.s32 %s24, %s36
      %p154 = scmp.eq.s32.totalorder %s153, 0
      %s156 = sadd.s32 %s155, 1
      %s157 = scalar_select %p154, %s155, %s156
      %p160 = pneg %p154
      %p161 = scmp.eq.s32.totalorder %s17, 1
      %p162 = por %p160, %p161
      %p163 = scmp.ne.s32.totalorder %s155, %s158
      %p164 = scmp.eq.s32.totalorder %s17, 0
      %p165 = por %p163, %p164
      %p166 = scmp.ne.s32.totalorder %s155, %s158
      %p167 = scmp.eq.s32.totalorder %s22, 1
      %p168 = por %p166, %p167
      %p169 = scmp.ne.s32.totalorder %s158, %s159
      %p170 = scmp.eq.s32.totalorder %s22, 0
      %p171 = por %p169, %p170
      %p172 = scmp.ne.s32.totalorder %s158, %s159
      %p173 = scmp.eq.s32.totalorder %s23, 1
      %p174 = por %p172, %p173
      %p176 = scmp.ne.s32.totalorder %s159, %s175
      %p177 = scmp.eq.s32.totalorder %s23, 0
      %p178 = por %p176, %p177
      %p179 = scmp.le.s32.totalorder 1, %s17
      %p180 = scmp.lt.s32.totalorder %s17, 3
      %p181 = pnand %p179, %p180
      %p182 = pneg %p181
      // Predicated region
      $region9: #{tpu_custom_call.1} parent=5 // pred_check
        _
      $region10: #{tpu_custom_call.1} parent=5 // pred_check_branch
        %184 = sbr.rel (%p181) target = $region12
      $region11: #{tpu_custom_call.1} parent=5 // pred_region
        %s185 = ssub.s32 %s17, 1
      $region12: #{tpu_custom_call.1} parent=5 // pred_fallthru
        _
      %p186 = scmp.lt.s32.totalorder %s17, 2
      // Predicated region
      $region13: #{tpu_custom_call.1} parent=5 // pred_check
        %p187 = pneg %p186
      $region14: #{tpu_custom_call.1} parent=5 // pred_check_branch
        %189 = sbr.rel (%p187) target = $region16
      $region15: #{tpu_custom_call.1} parent=5 // pred_region
        // Predicated region
        $region17: #{tpu_custom_call.1} parent=15 // pred_check
          %p190 = pneg %p55
        $region18: #{tpu_custom_call.1} parent=15 // pred_check_branch
          %192 = sbr.rel (%p190) target = $region20
        $region19: #{tpu_custom_call.1} parent=15 // pred_region
          %s193 = sadd.s32 %s24, %s25
          %p194 = scmp.lt.s32.totalorder %s193, 1
          %s195 = scalar_select %p194, %s193, 1
          %s196 = smul.u32 4, %s195
          %p197 = scmp.lt.s32.totalorder %s196, 7
          %s198 = scalar_select %p197, %s196, 7
          %s199 = smul.addr %s198, 8
          %s200 = scalar_lea.vmem %s0, %s199
          %s201 = sadd.s32 %s24, %s25
          %p202 = scmp.lt.s32.totalorder %s201, 1
          %s203 = scalar_select %p202, %s201, 1
          %s204 = smul.u32 4, %s203
        $region20: #{tpu_custom_call.1} parent=15 // pred_fallthru
          _
        // Predicated region
        $region21: #{tpu_custom_call.1} parent=15 // pred_check
          %p205 = pneg %p87
        $region22: #{tpu_custom_call.1} parent=15 // pred_check_branch
          %207 = sbr.rel (%p205) target = $region24
        $region23: #{tpu_custom_call.1} parent=15 // pred_region
          %s208 = sadd.s32 %s24, %s25
          %p209 = scmp.lt.s32.totalorder %s208, 1
          %s210 = scalar_select %p209, %s208, 1
          %s211 = smul.u32 4, %s210
          %p212 = scmp.lt.s32.totalorder %s211, 7
          %s213 = scalar_select %p212, %s211, 7
          %s214 = smul.addr %s213, 8
          %s215 = scalar_lea.vmem %s1, %s214
          %s216 = sadd.s32 %s24, %s25
          %p217 = scmp.lt.s32.totalorder %s216, 1
          %s218 = scalar_select %p217, %s216, 1
          %s219 = smul.u32 4, %s218
        $region24: #{tpu_custom_call.1} parent=15 // pred_fallthru
          _
      $region16: #{tpu_custom_call.1} parent=5 // pred_fallthru
        _
      %p220 = scmp.le.s32.totalorder 1, %s17
      %p221 = scmp.lt.s32.totalorder %s17, 3
      %p222 = pnand %p220, %p221
      %p223 = pneg %p222
      // Predicated region
      $region25: #{tpu_custom_call.1} parent=5 // pred_check
        _
      $region26: #{tpu_custom_call.1} parent=5 // pred_check_branch
        %225 = sbr.rel (%p222) target = $region28
      $region27: #{tpu_custom_call.1} parent=5 // pred_region
        %s226 = ssub.s32 %s17, 1
        %s227 = sadd.s32 %s26, %s27
        %p228 = scmp.lt.s32.totalorder %s227, 1
        %s229 = scalar_select %p228, %s227, 1
        %s230 = smul.u32 4, %s229
        %p231 = scmp.lt.s32.totalorder %s230, 7
        %s232 = scalar_select %p231, %s230, 7
        %s233 = smul.addr %s232, 8
        %s234 = scalar_lea.vmem %s0, %s233
        %p235 = pneg %p61
        %p236 = pneg %p58
        %s237 = sadd.s32 %s26, %s27
        %p238 = scmp.lt.s32.totalorder %s237, 1
        %s239 = scalar_select %p238, %s237, 1
        %s240 = smul.u32 4, %s239
        %p241 = scmp.lt.s32.totalorder %s240, 7
        %s242 = scalar_select %p241, %s240, 7
        %s243 = smul.addr %s242, 8
        %s244 = scalar_lea.vmem %s1, %s243
        %p245 = pneg %p93
        %p246 = pneg %p90
        %p247 = pneg %p119
        %p248 = pneg %p116
        %s249 = sand.u32 %s106, 1
        %s250 = scalar_lea.sflag [#allocation3], %s249
        %s251 = sand.u32 %s106, 1
        %s252 = scalar_lea.vmem [#allocation2], %s251
        %p253 = pneg %p145
        %p254 = pneg %p142
        %s255 = sand.u32 %s22, 1
        %s256 = scalar_lea.sflag [#allocation5], %s255
        %s257 = sand.u32 %s132, 1
        %s258 = scalar_lea.vmem [#allocation4], %s257
        %p259 = pneg %p171
        %p260 = pneg %p168
        %s261 = sand.u32 %s22, 1
        %s262 = scalar_lea.sflag [#allocation5], %s261
        %s263 = sand.u32 %s158, 1
        %s264 = scalar_lea.vmem [#allocation6], %s263
        %s265 = sadd.s32 %s26, %s27
        %p266 = scmp.lt.s32.totalorder %s265, 1
        %s267 = scalar_select %p266, %s265, 1
        %s268 = smul.u32 4, %s267
        %p269 = scmp.lt.s32.totalorder %s268, 7
        %s270 = scalar_select %p269, %s268, 7
        %s271 = smul.addr %s270, 8
        %s272 = scalar_lea.vmem %s0, %s271
        %s273 = sadd.s32 %s26, %s27
        %p274 = scmp.lt.s32.totalorder %s273, 1
        %s275 = scalar_select %p274, %s273, 1
        %s276 = smul.u32 4, %s275
        %s277 = sadd.s32 %s26, %s27
        %p278 = scmp.lt.s32.totalorder %s277, 1
        %s279 = scalar_select %p278, %s277, 1
        %s280 = smul.u32 4, %s279
        %p281 = scmp.lt.s32.totalorder %s280, 7
        %s282 = scalar_select %p281, %s280, 7
        %s283 = smul.addr %s282, 8
        %s284 = scalar_lea.vmem %s1, %s283
        %s285 = sadd.s32 %s26, %s27
        %p286 = scmp.lt.s32.totalorder %s285, 1
        %s287 = scalar_select %p286, %s285, 1
        %s288 = smul.u32 4, %s287
        %p289 = scmp.eq.s32.totalorder %s27, 0
        // Predicated region
        $region29: #{tpu_custom_call.1} parent=27 // pred_check
          %p290 = pneg %p289
        $region30: #{tpu_custom_call.1} parent=27 // pred_check_branch
          %292 = sbr.rel (%p290) target = $region32
        $region31: #{tpu_custom_call.1} parent=27 // pred_region
          %vm293 = vcmask 114688
          %294 = vst.msk [vmem:[%s252] sm:$0x1] %vm293, 0.0
          %295 = vst.msk [vmem:[%s258] sm:$0x1] %vm293, 0.0
          %296 = vst.msk [vmem:[%s264] sm:$0x1] %vm293, 0.0
        $region32: #{tpu_custom_call.1} parent=27 // pred_fallthru
          _
        %v297 = vld [vmem:[%s272] sm:$0xff]
        %v298 = vld [vmem:[%s272 + $0x8] sm:$0xff]
        %v299 = vld [vmem:[%s272 + $0x10] sm:$0xff]
        %v300 = vld [vmem:[%s272 + $0x18] sm:$0xff]
        %v301 = vld [vmem:[%s284] sm:$0xff]
        %v302 = vld [vmem:[%s284 + $0x8] sm:$0xff]
        %v303 = vld [vmem:[%s284 + $0x10] sm:$0xff]
        %v304 = vld [vmem:[%s284 + $0x18] sm:$0xff]
        %vm305 = vcmask 130048
        %v306 = vsel %vm305, %v297, -inf
        %307 = vmax.xlane.f32.xlu0 %v306
        %v308 = vpop.xlane.xlu0 %307
        %v309 = vsel %vm305, %v298, -inf
        %310 = vmax.xlane.f32.xlu0 %v309
        %v311 = vpop.xlane.xlu0 %310
        %v312 = vsel %vm305, %v299, -inf
        %313 = vmax.xlane.f32.xlu0 %v312
        %v314 = vpop.xlane.xlu0 %313
        %v315 = vsel %vm305, %v300, -inf
        %316 = vmax.xlane.f32.xlu0 %v315
        %v317 = vpop.xlane.xlu0 %316
        %v318 = vsub.f32 %v297, %v308
        %v319 = vsub.f32 %v298, %v311
        %v320 = vsub.f32 %v299, %v314
        %v321 = vsub.f32 %v300, %v317
        %v322 = vmul.f32 %v318, 1.442695
        %v323 = vpow.pop %v322
        %v324 = vmul.f32 %v319, 1.442695
        %v325 = vpow.pop %v324
        %v326 = vmul.f32 %v320, 1.442695
        %v327 = vpow.pop %v326
        %v328 = vmul.f32 %v321, 1.442695
        %v329 = vpow.pop %v328
        %v330 = vsel %vm305, %v323, 0.0
        %331 = vadd.xlane.f32.xlu0 %v330
        %v332 = vpop.xlane.xlu0 %331
        %v333 = vsel %vm305, %v325, 0.0
        %334 = vadd.xlane.f32.xlu0 %v333
        %v335 = vpop.xlane.xlu0 %334
        %v336 = vsel %vm305, %v327, 0.0
        %337 = vadd.xlane.f32.xlu0 %v336
        %v338 = vpop.xlane.xlu0 %337
        %v339 = vsel %vm305, %v329, 0.0
        %340 = vadd.xlane.f32.xlu0 %v339
        %v341 = vpop.xlane.xlu0 %340
        %v342 = vrcp.pop %v332
        %v343 = vmul.f32 1.0, %v342
        %v344 = vrcp.pop %v335
        %v345 = vmul.f32 1.0, %v344
        %v346 = vrcp.pop %v338
        %v347 = vmul.f32 1.0, %v346
        %v348 = vrcp.pop %v341
        %v349 = vmul.f32 1.0, %v348
        %v350 = vlaneseq
        %v351 = vand.u32 %v350, 127
        %vm352 = vcmp.ge.f32.partialorder %v297, %v308
        %vm353 = vcmp.ge.f32.partialorder %v298, %v311
        %vm354 = vcmp.ge.f32.partialorder %v299, %v314
        %vm355 = vcmp.ge.f32.partialorder %v300, %v317
        %v356 = vsel %vm352, %v351, 16
        %v357 = vsel %vm353, %v351, 16
        %v358 = vsel %vm354, %v351, 16
        %v359 = vsel %vm355, %v351, 16
        %v360 = vsel %vm305, %v356, 2147483647
        %v361 = vand.u32 %v360, 65535
        %v362 = vshra.s32 %v360, 16
        %v363 = vcvt.s32.f32 %v361
        %v364 = vcvt.s32.f32 %v362
        %365 = vmin.xlane.f32.xlu0 %v364
        %v366 = vpop.xlane.xlu0 %365
        %vm367 = vcmp.eq.f32.partialorder %v364, %v366
        %v368 = vsel %vm367, %v363, inf
        %369 = vmin.xlane.f32.xlu0 %v368
        %v370 = vpop.xlane.xlu0 %369
        %v371 = vcvt.f32.s32 %v370
        %v372 = vcvt.f32.s32 %v366
        %v373 = vshll.u32 %v372, 16
        %v374 = vadd.s32 %v373, %v371
        %v375 = vsel %vm305, %v357, 2147483647
        %v376 = vand.u32 %v375, 65535
        %v377 = vshra.s32 %v375, 16
        %v378 = vcvt.s32.f32 %v376
        %v379 = vcvt.s32.f32 %v377
        %380 = vmin.xlane.f32.xlu0 %v379
        %v381 = vpop.xlane.xlu0 %380
        %vm382 = vcmp.eq.f32.partialorder %v379, %v381
        %v383 = vsel %vm382, %v378, inf
        %384 = vmin.xlane.f32.xlu0 %v383
        %v385 = vpop.xlane.xlu0 %384
        %v386 = vcvt.f32.s32 %v385
        %v387 = vcvt.f32.s32 %v381
        %v388 = vshll.u32 %v387, 16
        %v389 = vadd.s32 %v388, %v386
        %v390 = vsel %vm305, %v358, 2147483647
        %v391 = vand.u32 %v390, 65535
        %v392 = vshra.s32 %v390, 16
        %v393 = vcvt.s32.f32 %v391
        %v394 = vcvt.s32.f32 %v392
        %395 = vmin.xlane.f32.xlu0 %v394
        %v396 = vpop.xlane.xlu0 %395
        %vm397 = vcmp.eq.f32.partialorder %v394, %v396
        %v398 = vsel %vm397, %v393, inf
        %399 = vmin.xlane.f32.xlu0 %v398
        %v400 = vpop.xlane.xlu0 %399
        %v401 = vcvt.f32.s32 %v400
        %v402 = vcvt.f32.s32 %v396
        %v403 = vshll.u32 %v402, 16
        %v404 = vadd.s32 %v403, %v401
        %v405 = vsel %vm305, %v359, 2147483647
        %v406 = vand.u32 %v405, 65535
        %v407 = vshra.s32 %v405, 16
        %v408 = vcvt.s32.f32 %v406
        %v409 = vcvt.s32.f32 %v407
        %410 = vmin.xlane.f32.xlu0 %v409
        %v411 = vpop.xlane.xlu0 %410
        %vm412 = vcmp.eq.f32.partialorder %v409, %v411
        %v413 = vsel %vm412, %v408, inf
        %414 = vmin.xlane.f32.xlu0 %v413
        %v415 = vpop.xlane.xlu0 %414
        %v416 = vcvt.f32.s32 %v415
        %v417 = vcvt.f32.s32 %v411
        %v418 = vshll.u32 %v417, 16
        %v419 = vadd.s32 %v418, %v416
        %s420 = sadd.s32 %s26, %s27
        %s421 = smul.u32 %s420, 32
        %v422 = vlaneseq
        %v423 = vshrl.u32 %v422, 7
        %v424 = vadd.s32 %v423, 8
        %v425 = vadd.s32 %v423, 16
        %v426 = vadd.s32 %v423, 24
        %v427 = vstv %s421
        %v428 = vadd.s32 %v427, %v423
        %v429 = vadd.s32 %v427, %v424
        %v430 = vadd.s32 %v427, %v425
        %v431 = vadd.s32 %v427, %v426
        %vm432 = vcmp.lt.s32.totalorder %v428, 64
        %vm433 = vcmp.lt.s32.totalorder %v429, 64
        %vm434 = vcmp.lt.s32.totalorder %v430, 64
        %vm435 = vcmp.lt.s32.totalorder %v431, 64
        %vm436 = vcmp.eq.s32.totalorder %v374, %v301
        %vm437 = vcmp.eq.s32.totalorder %v389, %v302
        %vm438 = vcmp.eq.s32.totalorder %v404, %v303
        %vm439 = vcmp.eq.s32.totalorder %v419, %v304
        %vm440 = vmand %vm436, %vm432
        %vm441 = vmand %vm437, %vm433
        %vm442 = vmand %vm438, %vm434
        %vm443 = vmand %vm439, %vm435
        %v444 = vsel %vm440, 1, 0
        %v445 = vsel %vm441, 1, 0
        %v446 = vsel %vm442, 1, 0
        %v447 = vsel %vm443, 1, 0
        %v448 = vcvt.s32.f32 %v444
        %v449 = vcvt.s32.f32 %v445
        %v450 = vcvt.s32.f32 %v446
        %v451 = vcvt.s32.f32 %v447
        %v452 = vcvt.s32.f32 %v351
        %v453 = vrcp.pop 15.0
        %v454 = vmul.f32 %v452, %v453
        %v455 = vadd.f32 %v452, 1.0
        %v456 = vmul.f32 %v455, %v453
        %vm457 = vcmp.gt.f32.partialorder %v343, %v454
        %vm458 = vcmp.gt.f32.partialorder %v345, %v454
        %vm459 = vcmp.gt.f32.partialorder %v347, %v454
        %vm460 = vcmp.gt.f32.partialorder %v349, %v454
        %vm461 = vcmp.le.f32.partialorder %v343, %v456
        %vm462 = vcmp.le.f32.partialorder %v345, %v456
        %vm463 = vcmp.le.f32.partialorder %v347, %v456
        %vm464 = vcmp.le.f32.partialorder %v349, %v456
        %vm465 = vmand %vm457, %vm461
        %vm466 = vmand %vm458, %vm462
        %vm467 = vmand %vm459, %vm463
        %vm468 = vmand %vm460, %vm464
        %v469 = vsel %vm432, 1, 0
        %v470 = vsel %vm433, 1, 0
        %v471 = vsel %vm434, 1, 0
        %v472 = vsel %vm435, 1, 0
        %vm473 = vcmp.eq.s32.totalorder %v469, 1
        %vm474 = vcmp.eq.s32.totalorder %v470, 1
        %vm475 = vcmp.eq.s32.totalorder %v471, 1
        %vm476 = vcmp.eq.s32.totalorder %v472, 1
        %vm477 = vmand %vm465, %vm473
        %vm478 = vmand %vm466, %vm474
        %vm479 = vmand %vm467, %vm475
        %vm480 = vmand %vm468, %vm476
        %v481 = vsel %vm477, 1, 0
        %v482 = vsel %vm478, 1, 0
        %v483 = vsel %vm479, 1, 0
        %v484 = vsel %vm480, 1, 0
        %v485 = vcvt.s32.f32 %v481
        %v486 = vcvt.s32.f32 %v482
        %v487 = vcvt.s32.f32 %v483
        %v488 = vcvt.s32.f32 %v484
        %v489 = vld [vmem:[%s252] sm:$0x1]
        %vm490 = vcmask 121856
        %v491 = vsel %vm490, %v485, 0.0
        %v492 = vsel %vm490, %v486, 0.0
        %v493 = vadd.f32 %v491, %v492
        %v494 = vsel %vm490, %v487, 0.0
        %v495 = vadd.f32 %v493, %v494
        %v496 = vsel %vm490, %v488, 0.0
        %v497 = vadd.f32 %v495, %v496
        %v498 = vrot.slane %v497, 4
        %v499 = vadd.f32 %v497, %v498
        %v500 = vrot.slane %v499, 2
        %v501 = vadd.f32 %v499, %v500
        %v502 = vrot.slane %v501, 1
        %v503 = vadd.f32 %v501, %v502
        %v504 = vadd.f32 %v489, %v503
        %vm505 = vcmask 114688
        %506 = vst.msk [vmem:[%s252] sm:$0x1] %vm505, %v504
        %v507 = vld [vmem:[%s258] sm:$0x1]
        %v508 = vsel %vm477, %v343, 0.0
        %v509 = vsel %vm478, %v345, 0.0
        %v510 = vsel %vm479, %v347, 0.0
        %v511 = vsel %vm480, %v349, 0.0
        %v512 = vsel %vm490, %v508, 0.0
        %v513 = vsel %vm490, %v509, 0.0
        %v514 = vadd.f32 %v512, %v513
        %v515 = vsel %vm490, %v510, 0.0
        %v516 = vadd.f32 %v514, %v515
        %v517 = vsel %vm490, %v511, 0.0
        %v518 = vadd.f32 %v516, %v517
        %v519 = vrot.slane %v518, 4
        %v520 = vadd.f32 %v518, %v519
        %v521 = vrot.slane %v520, 2
        %v522 = vadd.f32 %v520, %v521
        %v523 = vrot.slane %v522, 1
        %v524 = vadd.f32 %v522, %v523
        %v525 = vadd.f32 %v507, %v524
        %526 = vst.msk [vmem:[%s258] sm:$0x1] %vm505, %v525
        %v527 = vld [vmem:[%s264] sm:$0x1]
        %529 = vset.pattern.permute.xlu0 0
        %530 = vperm.xlu0 %529, %v448
        %v531 = vpop.permute.xlu0 %530
        %534 = vset.pattern.permute.xlu0 0
        %535 = vperm.xlu0 %534, %v449
        %v536 = vpop.permute.xlu0 %535
        %539 = vset.pattern.permute.xlu0 0
        %540 = vperm.xlu0 %539, %v450
        %v541 = vpop.permute.xlu0 %540
        %544 = vset.pattern.permute.xlu0 0
        %545 = vperm.xlu0 %544, %v451
        %v546 = vpop.permute.xlu0 %545
        %v548 = vsel %vm477, %v531, 0.0
        %v549 = vsel %vm478, %v536, 0.0
        %v550 = vsel %vm479, %v541, 0.0
        %v551 = vsel %vm480, %v546, 0.0
        %v552 = vsel %vm490, %v548, 0.0
        %v553 = vsel %vm490, %v549, 0.0
        %v554 = vadd.f32 %v552, %v553
        %v555 = vsel %vm490, %v550, 0.0
        %v556 = vadd.f32 %v554, %v555
        %v557 = vsel %vm490, %v551, 0.0
        %v558 = vadd.f32 %v556, %v557
        %v559 = vrot.slane %v558, 4
        %v560 = vadd.f32 %v558, %v559
        %v561 = vrot.slane %v560, 2
        %v562 = vadd.f32 %v560, %v561
        %v563 = vrot.slane %v562, 1
        %v564 = vadd.f32 %v562, %v563
        %v565 = vadd.f32 %v527, %v564
        %566 = vst.msk [vmem:[%s264] sm:$0x1] %vm505, %v565
        %s567 = sand.u32 %s106, 1
        %s568 = scalar_lea.sflag [#allocation3], %s567
        %s569 = sand.u32 %s106, 1
        %s570 = scalar_lea.vmem [#allocation2], %s569
        %s571 = sand.u32 %s22, 1
        %s572 = scalar_lea.sflag [#allocation5], %s571
        %s573 = sand.u32 %s132, 1
        %s574 = scalar_lea.vmem [#allocation4], %s573
        %s575 = sand.u32 %s22, 1
        %s576 = scalar_lea.sflag [#allocation5], %s575
        %s577 = sand.u32 %s158, 1
        %s578 = scalar_lea.vmem [#allocation6], %s577
        // Predicated region
        $region33: #{tpu_custom_call.1} parent=27 // pred_check
          %p579 = pneg %p116
        $region34: #{tpu_custom_call.1} parent=27 // pred_check_branch
          %581 = sbr.rel (%p579) target = $region36
        $region35: #{tpu_custom_call.1} parent=27 // pred_region
          %s583 = ssub.s32 16, 16
          %584 = vsyncadd %s568, %s583
          %s585 = smul.addr %s26, 16
          %s586 = scalar_lea.hbm %s2, %s585
          %s588 = sshll.u32 %s570, 4
          %s589 = int_to_ptr.vmem [resolvable:$true] %s588
          %591 = dma.vmem_to_hbm [thread:$0]  %s589, 16, %s586, %s568
        $region36: #{tpu_custom_call.1} parent=27 // pred_fallthru
          _
        // Predicated region
        $region37: #{tpu_custom_call.1} parent=27 // pred_check
          %p592 = pneg %p142
        $region38: #{tpu_custom_call.1} parent=27 // pred_check_branch
          %594 = sbr.rel (%p592) target = $region40
        $region39: #{tpu_custom_call.1} parent=27 // pred_region
          %s596 = ssub.s32 16, 16
          %597 = vsyncadd %s572, %s596
          %s598 = smul.addr %s26, 16
          %s599 = scalar_lea.hbm %s3, %s598
          %s601 = sshll.u32 %s574, 4
          %s602 = int_to_ptr.vmem [resolvable:$true] %s601
          %604 = dma.vmem_to_hbm [thread:$0]  %s602, 16, %s599, %s572
        $region40: #{tpu_custom_call.1} parent=27 // pred_fallthru
          _
        // Predicated region
        $region41: #{tpu_custom_call.1} parent=27 // pred_check
          %p605 = pneg %p168
        $region42: #{tpu_custom_call.1} parent=27 // pred_check_branch
          %607 = sbr.rel (%p605) target = $region44
        $region43: #{tpu_custom_call.1} parent=27 // pred_region
          %s609 = ssub.s32 16, 16
          %610 = vsyncadd %s576, %s609
          %s611 = smul.addr %s26, 16
          %s612 = scalar_lea.hbm %s4, %s611
          %s614 = sshll.u32 %s578, 4
          %s615 = int_to_ptr.vmem [resolvable:$true] %s614
          %617 = dma.vmem_to_hbm [thread:$0]  %s615, 16, %s612, %s576
        $region44: #{tpu_custom_call.1} parent=27 // pred_fallthru
          _
      $region28: #{tpu_custom_call.1} parent=5 // pred_fallthru
        _
      %p618 = scmp.le.s32.totalorder 2, %s17
      // Predicated region
      $region45: #{tpu_custom_call.1} parent=5 // pred_check
        %p619 = pneg %p618
      $region46: #{tpu_custom_call.1} parent=5 // pred_check_branch
        %621 = sbr.rel (%p619) target = $region48
      $region47: #{tpu_custom_call.1} parent=5 // pred_region
        %s622 = ssub.s32 %s17, 2
        // Predicated region
        $region49: #{tpu_custom_call.1} parent=47 // pred_check
          %p623 = pneg %p122
        $region50: #{tpu_custom_call.1} parent=47 // pred_check_branch
          %625 = sbr.rel (%p623) target = $region52
        $region51: #{tpu_custom_call.1} parent=47 // pred_region
          %s626 = sand.u32 %s107, 1
          %s627 = scalar_lea.sflag [#allocation3], %s626
          %s628 = sand.u32 %s107, 1
          %s629 = scalar_lea.vmem [#allocation2], %s628
          %630 = dma.done %s627, 16
        $region52: #{tpu_custom_call.1} parent=47 // pred_fallthru
          _
        // Predicated region
        $region53: #{tpu_custom_call.1} parent=47 // pred_check
          %p631 = pneg %p148
        $region54: #{tpu_custom_call.1} parent=47 // pred_check_branch
          %633 = sbr.rel (%p631) target = $region56
        $region55: #{tpu_custom_call.1} parent=47 // pred_region
          %s634 = sand.u32 %s23, 1
          %s635 = scalar_lea.sflag [#allocation5], %s634
          %s636 = sand.u32 %s133, 1
          %s637 = scalar_lea.vmem [#allocation4], %s636
          %638 = dma.done %s635, 16
        $region56: #{tpu_custom_call.1} parent=47 // pred_fallthru
          _
        // Predicated region
        $region57: #{tpu_custom_call.1} parent=47 // pred_check
          %p639 = pneg %p174
        $region58: #{tpu_custom_call.1} parent=47 // pred_check_branch
          %641 = sbr.rel (%p639) target = $region60
        $region59: #{tpu_custom_call.1} parent=47 // pred_region
          %s642 = sand.u32 %s23, 1
          %s643 = scalar_lea.sflag [#allocation5], %s642
          %s644 = sand.u32 %s159, 1
          %s645 = scalar_lea.vmem [#allocation6], %s644
          %646 = dma.done %s643, 16
        $region60: #{tpu_custom_call.1} parent=47 // pred_fallthru
          _
      $region48: #{tpu_custom_call.1} parent=5 // pred_fallthru
        _
    $region6: #{tpu_custom_call.1} parent=1 // loop_footer
      %s21 = sadd.s32 1, %s17
    $region7: #{tpu_custom_call.1} parent=1 // loop_footer_branch
      %16 = sbr.rel target = $region3
    $region8: #{tpu_custom_call.1} parent=1 // loop_exit
      _
    %647 = vsyncpa [#allocation3], 1
    %s648 = scalar_lea.sflag [#allocation3], 1
    %649 = vsyncpa %s648, 1
    %650 = vsyncpa [#allocation5], 1
    %s651 = scalar_lea.sflag [#allocation5], 1
    %652 = vsyncpa %s651, 1

</llo_original>
